<compile_context>
chip_gen: v7x
topology: tpu7x:2x2x1
jax: 0.10.0
libtpu: 0.0.40
codegen_flags: <defaults>
</compile_context>

<pallas_src>
import functools
import math

import jax
import jax.numpy as jnp
from jax import lax
from jax.experimental import pallas as pl
from jax.experimental.pallas import tpu as pltpu


# -------------------- Pallas kernel --------------------
def _glucose_kernel(z_ref, state_ref, action_t_ref,
                    w1s_ref, w1a_ref, b1_ref,
                    wh_ref, bh_ref,
                    out_ref, *, O, n_action):
    # fc_layer1 (state part): NT matmul on the MXU, batch on the lane axis.
    #   (H, d_state) x (TB, d_state)^T -> (H, TB)
    h = lax.dot_general(
        w1s_ref[...], state_ref[...],
        dimension_numbers=(((1,), (1,)), ((), ())),
        preferred_element_type=jnp.float32)

    # fc_layer1 (action part): K == n_action (tiny) contraction as VPU broadcast FMAs
    # instead of a padded MXU dot.
    for a in range(n_action):
        h = h + w1a_ref[:, a:a + 1] * action_t_ref[a:a + 1, :]

    h = jnp.maximum(h + b1_ref[...], 0.0)                               # (H, TB)

    # fused mu/sigma heads: one MXU dot -> (2*O, TB), lane-dense
    heads = jnp.dot(wh_ref[...], h,
                    preferred_element_type=jnp.float32) + bh_ref[...]

    mu = jnp.tanh(heads[:O, :])                                         # (O, TB)

    sg_pre = heads[O:, :] + 1e-5
    # single-evaluation numerically-stable softplus
    sigma = jnp.maximum(sg_pre, 0.0) + jnp.log1p(jnp.exp(-jnp.abs(sg_pre)))

    z = z_ref[0]                                                        # scalar from SMEM
    cgm = jnp.clip(mu + sigma * z, -1.0, 1.0)

    # direct lane-dense row stores (no in-kernel concat): [mu | sigma | cgm] rows
    out_ref[0:O, :] = mu
    out_ref[O:2 * O, :] = sigma
    out_ref[2 * O:3 * O, :] = cgm


def _round_up(x, m):
    return ((x + m - 1) // m) * m


def glucose_forward(extract_state, action, params, z):
    """extract_state: (B, fe); action: (B, n_action); z: scalar.
    Returns (cgm_mu, cgm_sigma, cgm), each (B, n_action)."""
    B, d_state = extract_state.shape
    n_action = action.shape[1]
    H = params["w1_state"].shape[0]
    O = params["w_heads"].shape[0] // 2

    z_arr = jnp.asarray(z, jnp.float32).reshape(1)
    action_t = jnp.transpose(action)          # (n_action, B); free reshape for n_action == 1

    # Batch tile: full batch for small B; otherwise multiples of 128 (lane-dense output)
    # and at least 2 grid steps so the "parallel" axis shards across both v7x TCs.
    if B <= 256:
        TB = B
    else:
        TB = min(1024, _round_up(pl.cdiv(B, 2), 128))
    grid = (pl.cdiv(B, TB),)

    in_specs = [
        pl.BlockSpec(memory_space=pltpu.MemorySpace.SMEM),         # z (1,) scalar path
        pl.BlockSpec((TB, d_state), lambda i: (i, 0)),             # extract_state
        pl.BlockSpec((n_action, TB), lambda i: (0, i)),            # action^T
        pl.BlockSpec((H, d_state), lambda i: (0, 0)),              # W1 (state columns)
        pl.BlockSpec((H, n_action), lambda i: (0, 0)),             # W1 (action columns)
        pl.BlockSpec((H, 1), lambda i: (0, 0)),                    # b1
        pl.BlockSpec((2 * O, H), lambda i: (0, 0)),                # fused head weights
        pl.BlockSpec((2 * O, 1), lambda i: (0, 0)),                # fused head biases
    ]
    out_spec = pl.BlockSpec((3 * O, TB), lambda i: (0, i))
    out_shape = jax.ShapeDtypeStruct((3 * O, B), jnp.float32)

    flops = 2 * B * (d_state * H + n_action * H + H * 2 * O) + 12 * B * O
    bytes_accessed = 4 * (B * (d_state + n_action + 3 * O)
                          + H * (d_state + n_action + 1) + 2 * O * (H + 1) + 1)
    cost = pl.CostEstimate(flops=int(flops),
                           transcendentals=int(3 * B * O),
                           bytes_accessed=int(bytes_accessed))

    packed = pl.pallas_call(
        functools.partial(_glucose_kernel, O=O, n_action=n_action),
        grid=grid,
        in_specs=in_specs,
        out_specs=out_spec,
        out_shape=out_shape,
        cost_estimate=cost,
        compiler_params=pltpu.CompilerParams(
            dimension_semantics=("parallel",)),
    )(z_arr, extract_state, action_t,
      params["w1_state"], params["w1_act"], params["b1"],
      params["w_heads"], params["b_heads"])

    cgm_mu = packed[0:O, :].T
    cgm_sigma = packed[O:2 * O, :].T
    cgm = packed[2 * O:3 * O, :].T
    return cgm_mu, cgm_sigma, cgm


# -------------------- deterministic parameter init (mirrors nn.Linear + NormedLinear) -----
def _linear_init(key, in_f, out_f):
    kw, kb = jax.random.split(key)
    bound = 1.0 / math.sqrt(in_f)
    w = jax.random.uniform(kw, (out_f, in_f), jnp.float32, -bound, bound)   # (out, in)
    b = jax.random.uniform(kb, (out_f,), jnp.float32, -bound, bound)
    return w, b


def _normed_linear_init(key, in_f, out_f, scale):
    w, b = _linear_init(key, in_f, out_f)
    norm = jnp.linalg.norm(w, axis=1, keepdims=True)                        # p=2 over dim=1
    w = w * (scale / norm)
    return w, b


def make_params(key, feature_extractor, n_action):
    last_hidden = feature_extractor
    k1, k2, k3 = jax.random.split(key, 3)
    w1, b1 = _linear_init(k1, feature_extractor + n_action, last_hidden)    # (H, fe+na)
    wmu, bmu = _normed_linear_init(k2, last_hidden, n_action, scale=0.1)    # (O, H)
    wsg, bsg = _normed_linear_init(k3, last_hidden, n_action, scale=0.1)

    return {
        # fc_layer1 kept in PyTorch (out, in) layout, split so concat fuses into the kernel
        "w1_state": w1[:, :feature_extractor],                              # (H, fe)
        "w1_act":   w1[:, feature_extractor:],                              # (H, n_action)
        "b1":       b1.reshape(-1, 1),                                      # (H, 1)
        # fused mu/sigma heads, (out, in) layout
        "w_heads":  jnp.concatenate([wmu, wsg], axis=0),                    # (2*O, H)
        "b_heads":  jnp.concatenate([bmu, bsg]).reshape(-1, 1),             # (2*O, 1)
    }


def _reference(extract_state, action, params, z, O):
    sa = jnp.concatenate([extract_state, action], axis=1)
    w1_full = jnp.concatenate([params["w1_state"], params["w1_act"]], axis=1)   # (H, fe+na)
    h = jax.nn.relu(sa @ w1_full.T + params["b1"][:, 0])
    heads = h @ params["w_heads"].T + params["b_heads"][:, 0]
    mu = jnp.tanh(heads[:, :O])
    sg = jax.nn.softplus(heads[:, O:] + 1e-5)    # eps inside softplus, as in the PyTorch source
    cgm = jnp.clip(mu + sg * z, -1.0, 1.0)
    return mu, sg, cgm


if __name__ == "__main__":
    # Config consistent with GlucoseModel: n_hidden=32, n_rnn_layers=1, directions=1,
    # n_action=1  ->  feature_extractor = last_hidden = 32
    n_hidden, n_layers, directions, n_action = 32, 1, 1, 1
    feature_extractor = n_hidden * n_layers * directions
    batch = 2
    O = n_action

    key = jax.random.PRNGKey(0)
    k_params, k_state, k_action, k_z = jax.random.split(key, 4)

    params = make_params(k_params, feature_extractor, n_action)
    extract_state = jax.random.normal(k_state, (batch, feature_extractor), jnp.float32)
    action = jax.random.normal(k_action, (batch, n_action), jnp.float32)
    z = jax.random.normal(k_z, ())   # single scalar sample (matches torch Normal(0,1).sample())

    cgm_mu, cgm_sigma, cgm = glucose_forward(extract_state, action, params, z)
    jax.block_until_ready((cgm_mu, cgm_sigma, cgm))

    mu_ref, sg_ref, cgm_ref = _reference(extract_state, action, params, z, O)
    assert cgm_mu.shape == (batch, O) and cgm_sigma.shape == (batch, O) and cgm.shape == (batch, O)
    assert jnp.allclose(cgm_mu, mu_ref, atol=1e-5)
    assert jnp.allclose(cgm_sigma, sg_ref, atol=1e-5)
    assert jnp.allclose(cgm, cgm_ref, atol=1e-5)

    # second sanity check at a larger batch to exercise the multi-tile (grid > 1) path
    batch2 = 512
    ks2, ka2 = jax.random.split(jax.random.PRNGKey(1))
    es2 = jax.random.normal(ks2, (batch2, feature_extractor), jnp.float32)
    ac2 = jax.random.normal(ka2, (batch2, n_action), jnp.float32)
    mu2, sg2, cg2 = glucose_forward(es2, ac2, params, z)
    jax.block_until_ready((mu2, sg2, cg2))
    mu2_r, sg2_r, cg2_r = _reference(es2, ac2, params, z, O)
    assert jnp.allclose(mu2, mu2_r, atol=1e-5)
    assert jnp.allclose(sg2, sg2_r, atol=1e-5)
    assert jnp.allclose(cg2, cg2_r, atol=1e-5)

    print("KERNEL_OK")
</pallas_src>

<mosaic_0001>
module attributes {stable_mosaic.version = 11 : i64} {
  func.func @_glucose_kernel(%arg0: i32, %arg1: memref<1xf32, #tpu.memory_space<smem>>, %arg2: memref<2x32xf32, #tpu.memory_space<vmem>>, %arg3: memref<1x2xf32, #tpu.memory_space<vmem>>, %arg4: memref<32x32xf32, #tpu.memory_space<vmem>>, %arg5: memref<32x1xf32, #tpu.memory_space<vmem>>, %arg6: memref<32x1xf32, #tpu.memory_space<vmem>>, %arg7: memref<2x32xf32, #tpu.memory_space<vmem>>, %arg8: memref<2x1xf32, #tpu.memory_space<vmem>>, %arg9: memref<3x2xf32, #tpu.memory_space<vmem>>) attributes {dimension_semantics = [#tpu.dimension_semantics<parallel>], iteration_bounds = array<i64: 1>, scalar_prefetch = 0 : i64, scratch_operands = 0 : i64, tpu.core_type = #tpu.core_type<tc>, window_params = [{transform_indices = @transform_0, window_bounds = array<i64: 1>}, {transform_indices = @transform_1, window_bounds = array<i64: 2, 32>}, {transform_indices = @transform_2, window_bounds = array<i64: 1, 2>}, {pipeline_mode = #tpu.pipeline_mode<synchronous>, transform_indices = @transform_3, window_bounds = array<i64: 32, 32>}, {pipeline_mode = #tpu.pipeline_mode<synchronous>, transform_indices = @transform_4, window_bounds = array<i64: 32, 1>}, {pipeline_mode = #tpu.pipeline_mode<synchronous>, transform_indices = @transform_5, window_bounds = array<i64: 32, 1>}, {pipeline_mode = #tpu.pipeline_mode<synchronous>, transform_indices = @transform_6, window_bounds = array<i64: 2, 32>}, {pipeline_mode = #tpu.pipeline_mode<synchronous>, transform_indices = @transform_7, window_bounds = array<i64: 2, 1>}, {transform_indices = @transform_8, window_bounds = array<i64: 3, 2>}]} {
    %c0 = arith.constant 0 : index
    %c0_0 = arith.constant 0 : index
    %0 = vector.load %arg4[%c0, %c0_0] : memref<32x32xf32, #tpu.memory_space<vmem>>, vector<32x32xf32>
    %c0_1 = arith.constant 0 : index
    %c0_2 = arith.constant 0 : index
    %1 = vector.load %arg2[%c0_1, %c0_2] : memref<2x32xf32, #tpu.memory_space<vmem>>, vector<2x32xf32>
    %cst = arith.constant dense<0.000000e+00> : vector<32x2xf32>
    %2 = tpu.matmul %0, %1, %cst {dimension_numbers = #tpu.dot_dimension_numbers<[1], [1], [0], [0], [0, 0, 1, 0], [], []>} : vector<32x32xf32>, vector<2x32xf32>, vector<32x2xf32> -> vector<32x2xf32>
    %c0_3 = arith.constant 0 : index
    %c0_4 = arith.constant 0 : index
    %3 = vector.load %arg5[%c0_3, %c0_4] : memref<32x1xf32, #tpu.memory_space<vmem>>, vector<32x1xf32>
    %c0_5 = arith.constant 0 : index
    %c0_6 = arith.constant 0 : index
    %4 = vector.load %arg3[%c0_5, %c0_6] : memref<1x2xf32, #tpu.memory_space<vmem>>, vector<1x2xf32>
    %5 = vector.broadcast %3 : vector<32x1xf32> to vector<32x2xf32>
    %6 = vector.broadcast %4 : vector<1x2xf32> to vector<32x2xf32>
    %7 = arith.mulf %5, %6 : vector<32x2xf32>
    %8 = arith.addf %2, %7 : vector<32x2xf32>
    %c0_7 = arith.constant 0 : index
    %c0_8 = arith.constant 0 : index
    %9 = vector.load %arg6[%c0_7, %c0_8] : memref<32x1xf32, #tpu.memory_space<vmem>>, vector<32x1xf32>
    %10 = vector.broadcast %9 : vector<32x1xf32> to vector<32x2xf32>
    %11 = arith.addf %8, %10 : vector<32x2xf32>
    %cst_9 = arith.constant 0.000000e+00 : f32
    %12 = vector.broadcast %cst_9 : f32 to vector<32x2xf32>
    %13 = arith.maximumf %11, %12 : vector<32x2xf32>
    %c0_10 = arith.constant 0 : index
    %c0_11 = arith.constant 0 : index
    %14 = vector.load %arg7[%c0_10, %c0_11] : memref<2x32xf32, #tpu.memory_space<vmem>>, vector<2x32xf32>
    %cst_12 = arith.constant dense<0.000000e+00> : vector<2x2xf32>
    %15 = tpu.matmul %14, %13, %cst_12 {dimension_numbers = #tpu.dot_dimension_numbers<[1], [0], [0], [1], [0, 0, 1, 1], [], []>} : vector<2x32xf32>, vector<32x2xf32>, vector<2x2xf32> -> vector<2x2xf32>
    %c0_13 = arith.constant 0 : index
    %c0_14 = arith.constant 0 : index
    %16 = vector.load %arg8[%c0_13, %c0_14] : memref<2x1xf32, #tpu.memory_space<vmem>>, vector<2x1xf32>
    %17 = vector.broadcast %16 : vector<2x1xf32> to vector<2x2xf32>
    %18 = arith.addf %15, %17 : vector<2x2xf32>
    %19 = vector.extract_strided_slice %18 {offsets = [0, 0], sizes = [1, 2], strides = [1, 1]} : vector<2x2xf32> to vector<1x2xf32>
    %20 = math.tanh %19 : vector<1x2xf32>
    %21 = vector.extract_strided_slice %18 {offsets = [1, 0], sizes = [1, 2], strides = [1, 1]} : vector<2x2xf32> to vector<1x2xf32>
    %cst_15 = arith.constant 9.99999974E-6 : f32
    %22 = vector.broadcast %cst_15 : f32 to vector<1x2xf32>
    %23 = arith.addf %21, %22 : vector<1x2xf32>
    %cst_16 = arith.constant 0.000000e+00 : f32
    %24 = vector.broadcast %cst_16 : f32 to vector<1x2xf32>
    %25 = arith.maximumf %23, %24 : vector<1x2xf32>
    %26 = math.absf %23 : vector<1x2xf32>
    %cst_17 = arith.constant 0.000000e+00 : f32
    %27 = vector.broadcast %cst_17 : f32 to vector<1x2xf32>
    %28 = arith.subf %27, %26 : vector<1x2xf32>
    %29 = math.exp %28 : vector<1x2xf32>
    %30 = math.log1p %29 : vector<1x2xf32>
    %31 = arith.addf %25, %30 : vector<1x2xf32>
    %c0_18 = arith.constant 0 : index
    %32 = memref.load %arg1[%c0_18] : memref<1xf32, #tpu.memory_space<smem>>
    %33 = vector.broadcast %32 : f32 to vector<1x2xf32>
    %34 = arith.mulf %31, %33 : vector<1x2xf32>
    %35 = arith.addf %20, %34 : vector<1x2xf32>
    %cst_19 = arith.constant -1.000000e+00 : f32
    %cst_20 = arith.constant 1.000000e+00 : f32
    %36 = vector.broadcast %cst_19 : f32 to vector<1x2xf32>
    %37 = arith.maximumf %36, %35 : vector<1x2xf32>
    %38 = vector.broadcast %cst_20 : f32 to vector<1x2xf32>
    %39 = arith.minimumf %38, %37 : vector<1x2xf32>
    %c0_21 = arith.constant 0 : index
    %c0_22 = arith.constant 0 : index
    %40 = vector.load %arg9[%c0_21, %c0_22] : memref<3x2xf32, #tpu.memory_space<vmem>>, vector<1x2xf32>
    tpu.vector_store %arg9[%c0_21, %c0_22], %20 {strides = array<i32>} : memref<3x2xf32, #tpu.memory_space<vmem>>, vector<1x2xf32>,
    %c1 = arith.constant 1 : index
    %c0_23 = arith.constant 0 : index
    %41 = vector.load %arg9[%c1, %c0_23] : memref<3x2xf32, #tpu.memory_space<vmem>>, vector<1x2xf32>
    tpu.vector_store %arg9[%c1, %c0_23], %31 {strides = array<i32>} : memref<3x2xf32, #tpu.memory_space<vmem>>, vector<1x2xf32>,
    %c2 = arith.constant 2 : index
    %c0_24 = arith.constant 0 : index
    %42 = vector.load %arg9[%c2, %c0_24] : memref<3x2xf32, #tpu.memory_space<vmem>>, vector<1x2xf32>
    tpu.vector_store %arg9[%c2, %c0_24], %39 {strides = array<i32>} : memref<3x2xf32, #tpu.memory_space<vmem>>, vector<1x2xf32>,
    return
  }
  func.func @transform_0(%arg0: i32) -> i32 {
    %c0_i32 = arith.constant 0 : i32
    %c0_i32_0 = arith.constant 0 : i32
    return %c0_i32 : i32
  }
  func.func @transform_1(%arg0: i32) -> (i32, i32) {
    %c0_i32 = arith.constant 0 : i32
    %c0_i32_0 = arith.constant 0 : i32
    return %arg0, %c0_i32 : i32, i32
  }
  func.func @transform_2(%arg0: i32) -> (i32, i32) {
    %c0_i32 = arith.constant 0 : i32
    %c0_i32_0 = arith.constant 0 : i32
    return %c0_i32, %arg0 : i32, i32
  }
  func.func @transform_3(%arg0: i32) -> (i32, i32) {
    %c0_i32 = arith.constant 0 : i32
    %c0_i32_0 = arith.constant 0 : i32
    %c0_i32_1 = arith.constant 0 : i32
    return %c0_i32, %c0_i32_0 : i32, i32
  }
  func.func @transform_4(%arg0: i32) -> (i32, i32) {
    %c0_i32 = arith.constant 0 : i32
    %c0_i32_0 = arith.constant 0 : i32
    %c0_i32_1 = arith.constant 0 : i32
    return %c0_i32, %c0_i32_0 : i32, i32
  }
  func.func @transform_5(%arg0: i32) -> (i32, i32) {
    %c0_i32 = arith.constant 0 : i32
    %c0_i32_0 = arith.constant 0 : i32
    %c0_i32_1 = arith.constant 0 : i32
    return %c0_i32, %c0_i32_0 : i32, i32
  }
  func.func @transform_6(%arg0: i32) -> (i32, i32) {
    %c0_i32 = arith.constant 0 : i32
    %c0_i32_0 = arith.constant 0 : i32
    %c0_i32_1 = arith.constant 0 : i32
    return %c0_i32, %c0_i32_0 : i32, i32
  }
  func.func @transform_7(%arg0: i32) -> (i32, i32) {
    %c0_i32 = arith.constant 0 : i32
    %c0_i32_0 = arith.constant 0 : i32
    %c0_i32_1 = arith.constant 0 : i32
    return %c0_i32, %c0_i32_0 : i32, i32
  }
  func.func @transform_8(%arg0: i32) -> (i32, i32) {
    %c0_i32 = arith.constant 0 : i32
    %c0_i32_0 = arith.constant 0 : i32
    return %c0_i32, %arg0 : i32, i32
  }
}

</mosaic_0001>

<llo_original>
// kernel: tpu_custom_call.1
$region0: #{tpu_custom_call.1}
  #allocation0 [shape = 'u32[]', space=smem, size = 0x4, offset = 0x4, fixed_abs, tag = 'smem constant byte address 0x4 - core index']
  #allocation1 [shape = 'u32[144,128]{1,0:T(1,128)}', space=vmem, size = 0x12000, scoped, tag = 'internal scratch']
  #allocation2 [shape = 'f32[1]{0:T(128)S(6)}', space=smem, size = 0x200, scoped, tag = 'scoped memory for tpu_custom_call.1']
  %s0 = inlined_call_operand.<no memory space> [shape: f32[1], index: 0, kind: input, shape index: {}]
  %s1 = inlined_call_operand.vmem [shape: f32[2,32], index: 1, kind: input, shape index: {}]
  %s2 = inlined_call_operand.vmem [shape: f32[1,2], index: 2, kind: input, shape index: {}]
  %s3 = inlined_call_operand.vmem [shape: f32[32,32], index: 3, kind: input, shape index: {}]
  %s4 = inlined_call_operand.vmem [shape: f32[32,1], index: 4, kind: input, shape index: {}]
  %s5 = inlined_call_operand.vmem [shape: f32[32,1], index: 5, kind: input, shape index: {}]
  %s6 = inlined_call_operand.vmem [shape: f32[2,32], index: 6, kind: input, shape index: {}]
  %s7 = inlined_call_operand.vmem [shape: f32[2,1], index: 7, kind: input, shape index: {}]
  %s8 = inlined_call_operand.vmem [shape: f32[3,2], index: 8, kind: output, shape index: {}]
  %s9 = sld [smem:[#allocation0]]
  $region42: #{tpu_custom_call.1} parent=0
    _
  %s11 = ssub.s32 1, %s9
  %s12 = scalar_select 0, %s11, %s9
  %13 = sst [smem:[#allocation2]] %s0
  // Predicated region
  $region2: #{tpu_custom_call.1} parent=0 // pred_check
    _
  $region3: #{tpu_custom_call.1} parent=0 // pred_check_branch
    %15 = sbr.rel (0) target = $region5
  $region4: #{tpu_custom_call.1} parent=0 // pred_region
    _
  $region5: #{tpu_custom_call.1} parent=0 // pred_fallthru
    _
  // Predicated region
  $region6: #{tpu_custom_call.1} parent=0 // pred_check
    _
  $region7: #{tpu_custom_call.1} parent=0 // pred_check_branch
    %17 = sbr.rel (0) target = $region9
  $region8: #{tpu_custom_call.1} parent=0 // pred_region
    _
  $region9: #{tpu_custom_call.1} parent=0 // pred_fallthru
    _
  // Predicated region
  $region10: #{tpu_custom_call.1} parent=0 // pred_check
    _
  $region11: #{tpu_custom_call.1} parent=0 // pred_check_branch
    %19 = sbr.rel (0) target = $region13
  $region12: #{tpu_custom_call.1} parent=0 // pred_region
    _
  $region13: #{tpu_custom_call.1} parent=0 // pred_fallthru
    _
  // Predicated region
  $region14: #{tpu_custom_call.1} parent=0 // pred_check
    _
  $region15: #{tpu_custom_call.1} parent=0 // pred_check_branch
    %21 = sbr.rel (0) target = $region17
  $region16: #{tpu_custom_call.1} parent=0 // pred_region
    _
  $region17: #{tpu_custom_call.1} parent=0 // pred_fallthru
    _
  // Predicated region
  $region18: #{tpu_custom_call.1} parent=0 // pred_check
    _
  $region19: #{tpu_custom_call.1} parent=0 // pred_check_branch
    %23 = sbr.rel (0) target = $region21
  $region20: #{tpu_custom_call.1} parent=0 // pred_region
    _
  $region21: #{tpu_custom_call.1} parent=0 // pred_fallthru
    _
  // Predicated region
  $region22: #{tpu_custom_call.1} parent=0 // pred_check
    _
  $region23: #{tpu_custom_call.1} parent=0 // pred_check_branch
    %25 = sbr.rel (0) target = $region25
  $region24: #{tpu_custom_call.1} parent=0 // pred_region
    _
  $region25: #{tpu_custom_call.1} parent=0 // pred_fallthru
    _
  // Predicated region
  $region26: #{tpu_custom_call.1} parent=0 // pred_check
    _
  $region27: #{tpu_custom_call.1} parent=0 // pred_check_branch
    %27 = sbr.rel (0) target = $region29
  $region28: #{tpu_custom_call.1} parent=0 // pred_region
    _
  $region29: #{tpu_custom_call.1} parent=0 // pred_fallthru
    _
  // Predicated region
  $region30: #{tpu_custom_call.1} parent=0 // pred_check
    _
  $region31: #{tpu_custom_call.1} parent=0 // pred_check_branch
    %29 = sbr.rel (0) target = $region33
  $region32: #{tpu_custom_call.1} parent=0 // pred_region
    _
  $region33: #{tpu_custom_call.1} parent=0 // pred_fallthru
    _
  %v30 = vld [vmem:[%s3] sm:$0xff]
  %v31 = vld [vmem:[%s3 + $0x8] sm:$0xff]
  %v32 = vld [vmem:[%s3 + $0x10] sm:$0xff]
  %v33 = vld [vmem:[%s3 + $0x18] sm:$0xff]
  %v34 = vld [vmem:[%s1] sm:$0x3]
  %v35 = vld [vmem:[%s4] sm:$0xff]
  %v36 = vld [vmem:[%s4 + $0x8] sm:$0xff]
  %v37 = vld [vmem:[%s4 + $0x10] sm:$0xff]
  %v38 = vld [vmem:[%s4 + $0x18] sm:$0xff]
  %v39 = vld [vmem:[%s2] sm:$0x1]
  %41 = vset.pattern.permute.xlu0 0
  %42 = vperm.xlu0 %41, %v35
  %v43 = vpop.permute.xlu0 %42
  %46 = vset.pattern.permute.xlu0 0
  %47 = vperm.xlu0 %46, %v36
  %v48 = vpop.permute.xlu0 %47
  %51 = vset.pattern.permute.xlu0 0
  %52 = vperm.xlu0 %51, %v37
  %v53 = vpop.permute.xlu0 %52
  %56 = vset.pattern.permute.xlu0 0
  %57 = vperm.xlu0 %56, %v38
  %v58 = vpop.permute.xlu0 %57
  %v61 = vlaneseq
  %v62 = vshrl.u32 %v61, 7
  %v63 = vsub.s32 0, %v62
  %v64 = vrot.slane %v39, %v63
  %v66 = vmul.f32 %v43, %v64
  %v67 = vmul.f32 %v48, %v64
  %v68 = vmul.f32 %v53, %v64
  %v69 = vmul.f32 %v58, %v64
  %vm70 = vcmask 261120
  %v72 = vsel %vm70, %v30, 0
  %v75 = vsel %vm70, %v31, 0
  %v78 = vsel %vm70, %v32, 0
  %v81 = vsel %vm70, %v33, 0
  %v84 = vsel %vm70, %v34, 0
  %86 = vmatprep.subr.mxu0 0.0
  %87 = vmatpush1.xpose.msra.mxu0 %v84
  %88 = vmatprep.subr.mxu0 0.0
  %89 = vmatpush1.xpose.msra.mxu0 0.0
  %90 = vmatprep.subr.mxu0 0.0
  %91 = vmatpush1.xpose.msra.mxu0 0.0
  %92 = vmatprep.subr.mxu0 0.0
  %93 = vmatpush1.xpose.msra.mxu0 0.0
  %94 = vmatprep.subr.mxu0 0.0
  %95 = vmatpush1.xpose.msra.mxu0 0.0
  %96 = vmatprep.subr.mxu0 0.0
  %97 = vmatpush1.xpose.msra.mxu0 0.0
  %98 = vmatprep.subr.mxu0 0.0
  %99 = vmatpush1.xpose.msra.mxu0 0.0
  %100 = vmatprep.subr.mxu0 0.0
  %101 = vmatpush1.xpose.msra.mxu0 0.0
  %102 = vmatprep.subr.mxu0 0.0
  %103 = vmatpush1.xpose.msra.mxu0 0.0
  %104 = vmatprep.subr.mxu0 0.0
  %105 = vmatpush1.xpose.msra.mxu0 0.0
  %106 = vmatprep.subr.mxu0 0.0
  %107 = vmatpush1.xpose.msra.mxu0 0.0
  %108 = vmatprep.subr.mxu0 0.0
  %109 = vmatpush1.xpose.msra.mxu0 0.0
  %110 = vmatprep.subr.mxu0 0.0
  %111 = vmatpush1.xpose.msra.mxu0 0.0
  %112 = vmatprep.subr.mxu0 0.0
  %113 = vmatpush1.xpose.msra.mxu0 0.0
  %114 = vmatprep.subr.mxu0 0.0
  %115 = vmatpush1.xpose.msra.mxu0 0.0
  %116 = vmatprep.subr.mxu0 0.0
  %117 = vmatpush1.xpose.msra.mxu0 0.0
  %118 = vmatprep.subr.mxu0 0.0
  %119 = vmatpush1.xpose.msra.mxu0 0.0
  %120 = vmatprep.subr.mxu0 0.0
  %121 = vmatpush1.xpose.msra.mxu0 0.0
  %122 = vmatprep.subr.mxu0 0.0
  %123 = vmatpush1.xpose.msra.mxu0 0.0
  %124 = vmatprep.subr.mxu0 0.0
  %125 = vmatpush1.xpose.msra.mxu0 0.0
  %126 = vmatprep.subr.mxu0 0.0
  %127 = vmatpush1.xpose.msra.mxu0 0.0
  %128 = vmatprep.subr.mxu0 0.0
  %129 = vmatpush1.xpose.msra.mxu0 0.0
  %130 = vmatprep.subr.mxu0 0.0
  %131 = vmatpush1.xpose.msra.mxu0 0.0
  %132 = vmatprep.subr.mxu0 0.0
  %133 = vmatpush1.xpose.msra.mxu0 0.0
  %134 = vmatprep.subr.mxu0 0.0
  %135 = vmatpush1.xpose.msra.mxu0 0.0
  %136 = vmatprep.subr.mxu0 0.0
  %137 = vmatpush1.xpose.msra.mxu0 0.0
  %138 = vmatprep.subr.mxu0 0.0
  %139 = vmatpush1.xpose.msra.mxu0 0.0
  %140 = vmatprep.subr.mxu0 0.0
  %141 = vmatpush1.xpose.msra.mxu0 0.0
  %142 = vmatprep.subr.mxu0 0.0
  %143 = vmatpush1.xpose.msra.mxu0 0.0
  %144 = vmatprep.subr.mxu0 0.0
  %145 = vmatpush1.xpose.msra.mxu0 0.0
  %146 = vmatprep.subr.mxu0 0.0
  %147 = vmatpush1.xpose.msra.mxu0 0.0
  %148 = vmatprep.subr.mxu0 0.0
  %149 = vmatpush1.xpose.msra.mxu0 0.0
  %150 = vmatprep.mubr.f32.mxu0 0.0
  %151 = vmatmul.mubr.f32.gmra.mrb[0].mxu0 %v72
  %v152 = vpop.f32.mrb[0].mxu0
  %v153 = vadd.f32 %v66, %v152
  %v154 = vpop.f32.mrb[0].mxu0
  %155 = vmatprep.mubr.f32.mxu0 0.0
  %156 = vmatmul.mubr.f32.gmra.mrb[0].mxu0 %v75
  %v157 = vpop.f32.mrb[0].mxu0
  %v158 = vadd.f32 %v67, %v157
  %v159 = vpop.f32.mrb[0].mxu0
  %160 = vmatprep.mubr.f32.mxu0 0.0
  %161 = vmatmul.mubr.f32.gmra.mrb[0].mxu0 %v78
  %v162 = vpop.f32.mrb[0].mxu0
  %v163 = vadd.f32 %v68, %v162
  %v164 = vpop.f32.mrb[0].mxu0
  %165 = vmatprep.mubr.f32.mxu0 0.0
  %166 = vmatmul.mubr.f32.gmra.mrb[0].mxu0 %v81
  %v167 = vpop.f32.mrb[0].mxu0
  %v168 = vadd.f32 %v69, %v167
  %v169 = vpop.f32.mrb[0].mxu0
  %170 = vdwg.mxu0
  %v171 = vld [vmem:[%s5] sm:$0xff]
  %v172 = vld [vmem:[%s5 + $0x8] sm:$0xff]
  %v173 = vld [vmem:[%s5 + $0x10] sm:$0xff]
  %v174 = vld [vmem:[%s5 + $0x18] sm:$0xff]
  %176 = vset.pattern.permute.xlu0 0
  %177 = vperm.xlu0 %176, %v171
  %v178 = vpop.permute.xlu0 %177
  %181 = vset.pattern.permute.xlu0 0
  %182 = vperm.xlu0 %181, %v172
  %v183 = vpop.permute.xlu0 %182
  %186 = vset.pattern.permute.xlu0 0
  %187 = vperm.xlu0 %186, %v173
  %v188 = vpop.permute.xlu0 %187
  %191 = vset.pattern.permute.xlu0 0
  %192 = vperm.xlu0 %191, %v174
  %v193 = vpop.permute.xlu0 %192
  %v195 = vadd.f32 %v153, %v178
  %v196 = vadd.f32 %v158, %v183
  %v197 = vadd.f32 %v163, %v188
  %v198 = vadd.f32 %v168, %v193
  %v199 = vmax.f32 %v195, 0.0
  %v200 = vmax.f32 %v196, 0.0
  %v201 = vmax.f32 %v197, 0.0
  %v202 = vmax.f32 %v198, 0.0
  %v203 = vld [vmem:[%s6] sm:$0x3]
  %v204 = vld [vmem:[%s7] sm:$0x3]
  %206 = vset.pattern.permute.xlu0 0
  %207 = vperm.xlu0 %206, %v204
  %v208 = vpop.permute.xlu0 %207
  %v211 = vsel %vm70, %v203, 0
  %213 = vmatprep.subr.mxu0 0.0
  %214 = vmatpush1.msra.mxu0 %v199
  %215 = vmatprep.subr.mxu0 0.0
  %216 = vmatpush1.msra.mxu0 %v200
  %217 = vmatprep.subr.mxu0 0.0
  %218 = vmatpush1.msra.mxu0 %v201
  %219 = vmatprep.subr.mxu0 0.0
  %220 = vmatpush1.msra.mxu0 %v202
  %221 = vmatprep.subr.mxu0 0.0
  %222 = vmatpush1.msra.mxu0 0.0
  %223 = vmatprep.subr.mxu0 0.0
  %224 = vmatpush1.msra.mxu0 0.0
  %225 = vmatprep.subr.mxu0 0.0
  %226 = vmatpush1.msra.mxu0 0.0
  %227 = vmatprep.subr.mxu0 0.0
  %228 = vmatpush1.msra.mxu0 0.0
  %229 = vmatprep.subr.mxu0 0.0
  %230 = vmatpush1.msra.mxu0 0.0
  %231 = vmatprep.subr.mxu0 0.0
  %232 = vmatpush1.msra.mxu0 0.0
  %233 = vmatprep.subr.mxu0 0.0
  %234 = vmatpush1.msra.mxu0 0.0
  %235 = vmatprep.subr.mxu0 0.0
  %236 = vmatpush1.msra.mxu0 0.0
  %237 = vmatprep.subr.mxu0 0.0
  %238 = vmatpush1.msra.mxu0 0.0
  %239 = vmatprep.subr.mxu0 0.0
  %240 = vmatpush1.msra.mxu0 0.0
  %241 = vmatprep.subr.mxu0 0.0
  %242 = vmatpush1.msra.mxu0 0.0
  %243 = vmatprep.subr.mxu0 0.0
  %244 = vmatpush1.msra.mxu0 0.0
  %245 = vmatprep.subr.mxu0 0.0
  %246 = vmatpush1.msra.mxu0 0.0
  %247 = vmatprep.subr.mxu0 0.0
  %248 = vmatpush1.msra.mxu0 0.0
  %249 = vmatprep.subr.mxu0 0.0
  %250 = vmatpush1.msra.mxu0 0.0
  %251 = vmatprep.subr.mxu0 0.0
  %252 = vmatpush1.msra.mxu0 0.0
  %253 = vmatprep.subr.mxu0 0.0
  %254 = vmatpush1.msra.mxu0 0.0
  %255 = vmatprep.subr.mxu0 0.0
  %256 = vmatpush1.msra.mxu0 0.0
  %257 = vmatprep.subr.mxu0 0.0
  %258 = vmatpush1.msra.mxu0 0.0
  %259 = vmatprep.subr.mxu0 0.0
  %260 = vmatpush1.msra.mxu0 0.0
  %261 = vmatprep.subr.mxu0 0.0
  %262 = vmatpush1.msra.mxu0 0.0
  %263 = vmatprep.subr.mxu0 0.0
  %264 = vmatpush1.msra.mxu0 0.0
  %265 = vmatprep.subr.mxu0 0.0
  %266 = vmatpush1.msra.mxu0 0.0
  %267 = vmatprep.subr.mxu0 0.0
  %268 = vmatpush1.msra.mxu0 0.0
  %269 = vmatprep.subr.mxu0 0.0
  %270 = vmatpush1.msra.mxu0 0.0
  %271 = vmatprep.subr.mxu0 0.0
  %272 = vmatpush1.msra.mxu0 0.0
  %273 = vmatprep.subr.mxu0 0.0
  %274 = vmatpush1.msra.mxu0 0.0
  %275 = vmatprep.subr.mxu0 0.0
  %276 = vmatpush1.msra.mxu0 0.0
  %277 = vmatprep.mubr.f32.mxu0 0.0
  %278 = vmatmul.mubr.f32.gmra.mrb[0].mxu0 %v211
  %v279 = vpop.f32.mrb[0].mxu0
  %v280 = vadd.f32 %v208, %v279
  %v281 = vpop.f32.mrb[0].mxu0
  %282 = vdwg.mxu0
  %v283 = vtanh.pop %v280
  %v284 = vadd.f32 %v280, 1e-05
  %v285 = vmax.f32 %v284, 0.0
  %v286 = vand.u32 2147483647, %v284
  %v287 = vsub.f32 0.0, %v286
  %v288 = vmul.f32 %v287, 1.442695
  %v289 = vpow.pop %v288
  %v290 = vadd.f32 %v289, 1.0
  %v291 = vlog2.pop %v290
  %v292 = vmul.f32 %v291, 0.6931472
  %v293 = vmul.f32 -0.5, %v289
  %v294 = vadd.f32 %v293, 1.0
  %v295 = vmul.f32 %v294, %v289
  %v296 = vand.u32 2147483647, %v289
  %vm297 = vcmp.lt.f32.partialorder %v296, 0.0004427343
  %v298 = vsel %vm297, %v295, %v292
  %v299 = vadd.f32 %v285, %v298
  %s300 = sld [smem:[#allocation2]]
  %v301 = vstv %s300
  %v302 = vmul.f32 %v299, %v301
  %v304 = vrot.slane %v302, 1
  %v306 = vadd.f32 %v283, %v304
  %v307 = vmax.f32 %v306, -1.0
  %v308 = vmin.f32 %v307, 1.0
  %vm309 = vcmask 8192
  %310 = vst.msk [vmem:[%s8] sm:$0x1] %vm309, %v283
  %vm311 = vcmask 9217
  %312 = vst.msk [vmem:[%s8] sm:$0x2] %vm311, %v299
  %313 = vst.msk [vmem:[%s8 + $0x2] sm:$0x1] %vm309, %v308
  // Predicated region
  $region34: #{tpu_custom_call.1} parent=0 // pred_check
    _
  $region35: #{tpu_custom_call.1} parent=0 // pred_check_branch
    %315 = sbr.rel (0) target = $region37
  $region36: #{tpu_custom_call.1} parent=0 // pred_region
    _
  $region37: #{tpu_custom_call.1} parent=0 // pred_fallthru
    _
  // Predicated region
  $region38: #{tpu_custom_call.1} parent=0 // pred_check
    _
  $region39: #{tpu_custom_call.1} parent=0 // pred_check_branch
    %317 = sbr.rel (0) target = $region41
  $region40: #{tpu_custom_call.1} parent=0 // pred_region
    _
  $region41: #{tpu_custom_call.1} parent=0 // pred_fallthru
    _

</llo_original>
